<compile_context>
chip_gen: v7x
topology: tpu7x:2x2x1
jax: 0.10.0
libtpu: 0.0.40
codegen_flags: <defaults>
</compile_context>

<pallas_src>
import jax
import jax.numpy as jnp
from jax.experimental import pallas as pl
from jax.experimental.pallas import tpu as pltpu

_SUBLANE = 8
_LANE = 128
_TM_MAX = 1024


def _round_up(x, m):
    return (x + m - 1) // m * m


def _pick_row_tile(r):
    """Row-tile size: as large as possible (<= 1024 rows) to amortize the
    ~0.35 us per-grid-step overhead, but keep >= 2 grid steps when R is big
    enough so the "parallel" row axis can shard across TensorCores (v7x)."""
    r8 = _round_up(r, _SUBLANE)
    if r8 <= 512:
        return r8                              # single tile; tiny problem
    half = _round_up((r8 + 1) // 2, _LANE)     # >= 2 steps, 128-row aligned
    return min(_TM_MAX, half)


# ----------------------------- Pallas kernel ------------------------------ #
def _nodes_kernel(h_ref, z_ref, w1_ref, w2_ref, b2_ref, o_ref):
    """One row tile of the fused Nodes MLP.

    h_ref : [TM, ndim]   f32  streamed node embeddings (h.view(-1, ndim) rows)
    z_ref : [TM, hdim]   f32  streamed pre-folded broadcast term (h_v/h_G/c/b1)
    w1_ref: [ndim, hdim] bf16 resident f_s_1 weight slice acting on h
    w2_ref: [1, hdim]    f32  resident f_s_2 weight, stored as a row
    b2_ref: [1, 1]       f32  resident f_s_2 bias
    o_ref : [TM, 1]      f32  per-row scores
    """
    # f_s_1 on the streamed part only: bf16 MXU operands, f32 accumulation.
    s = jnp.dot(h_ref[...].astype(jnp.bfloat16), w1_ref[...],
                preferred_element_type=jnp.float32)
    # bias + all broadcast terms are pre-folded into z; ReLU on the VPU (f32).
    s = jnp.maximum(s + z_ref[...], 0.0)
    # f_s_2: VPU multiply + XLU lane reduction instead of a second MXU pass.
    score = jnp.sum(s * w2_ref[...], axis=-1, keepdims=True)
    o_ref[...] = score + b2_ref[...]


def _fused_scores(h_flat, z, w1_h, w2_row, b2):
    """h_flat: [R, ndim] f32, z: [R, hdim] f32, w1_h: [ndim, hdim] bf16,
    w2_row: [1, hdim] f32, b2: [1, 1] f32  ->  [R] f32 scores."""
    r, ndim = h_flat.shape
    hdim = z.shape[1]

    tm = _pick_row_tile(r)
    r_p = _round_up(r, tm)
    if r_p != r:  # zero rows -> relu(0) = 0 -> score = b2; sliced off below
        pad = ((0, r_p - r), (0, 0))
        h_flat = jnp.pad(h_flat, pad)
        z = jnp.pad(z, pad)

    grid = (r_p // tm,)
    cost = pl.CostEstimate(
        flops=2 * r_p * ndim * hdim + 4 * r_p * hdim,
        transcendentals=0,
        bytes_accessed=(4 * r_p * (ndim + hdim + 1)      # h + z in, scores out
                        + 2 * ndim * hdim                # bf16 W1_h
                        + 4 * (hdim + 1)),               # w2 row + b2
    )

    out = pl.pallas_call(
        _nodes_kernel,
        out_shape=jax.ShapeDtypeStruct((r_p, 1), jnp.float32),
        grid=grid,
        in_specs=[
            pl.BlockSpec((tm, ndim), lambda i: (i, 0)),    # streamed h rows
            pl.BlockSpec((tm, hdim), lambda i: (i, 0)),    # streamed z rows
            pl.BlockSpec((ndim, hdim), lambda i: (0, 0)),  # resident W1_h
            pl.BlockSpec((1, hdim), lambda i: (0, 0)),     # resident w2 row
            pl.BlockSpec((1, 1), lambda i: (0, 0)),        # resident b2
        ],
        out_specs=pl.BlockSpec((tm, 1), lambda i: (i, 0)),
        compiler_params=pltpu.CompilerParams(
            dimension_semantics=("parallel",)),
        cost_estimate=cost,
    )(h_flat, z, w1_h, w2_row, b2)

    return out[:r, 0]


# ------------------------------ Module glue ------------------------------- #
def init_nodes_params(key, ndim, sdim):
    """Parameters in math orientation: y = x @ W + b (nn.Linear-style init)."""
    din = 2 * ndim + 2 * sdim
    hdim = ndim + sdim
    k1, k2, k3, k4 = jax.random.split(key, 4)
    lim1 = 1.0 / (din ** 0.5)
    lim2 = 1.0 / (hdim ** 0.5)
    return {
        "w1": jax.random.uniform(k1, (din, hdim), jnp.float32, -lim1, lim1),
        "b1": jax.random.uniform(k2, (hdim,), jnp.float32, -lim1, lim1),
        "w2": jax.random.uniform(k3, (hdim, 1), jnp.float32, -lim2, lim2),
        "b2": jax.random.uniform(k4, (1,), jnp.float32, -lim2, lim2),
    }


def prepare_nodes_params(params, ndim, sdim):
    """One-time, outside-jit weight prep (split by concat segment, reshape,
    bf16 cast of the MXU operand).  Call once and reuse across forwards."""
    w1, b1, w2, b2 = params["w1"], params["b1"], params["w2"], params["b2"]
    return {
        "w1_h":  w1[:ndim].astype(jnp.bfloat16),        # acts on h    [ndim, hdim]
        "w1_hv": w1[ndim:2 * ndim],                     # acts on h_v  [ndim, hdim]
        "w1_hg": w1[2 * ndim:2 * ndim + sdim],          # acts on h_G  [sdim, hdim]
        "w1_c":  w1[2 * ndim + sdim:],                  # acts on c    [sdim, hdim]
        "b1":    b1,                                    # [hdim]
        "w2":    w2.reshape(1, -1),                     # [1, hdim]
        "b2":    b2.reshape(1, 1),                      # [1, 1]
    }


@jax.jit
def nodes_forward(prep, h, h_v, h_G, c):
    """Forward pass of Nodes.

    h:   [B, idx, ndim]   per-node embeddings
    h_v: [B, ndim]        focus-node embedding
    h_G: [B, sdim]        graph embedding
    c:   [B, sdim]        conditioning vector
    returns: [B, idx]     scores == f_s_2(relu(f_s_1(cat(...)))).view(-1, idx)
    """
    _, idx, ndim = h.shape
    h_flat = h.reshape(-1, ndim)                       # h.view(-1, ndim): free

    # Broadcast part of f_s_1 folded into tiny per-batch matmuls, then laid
    # out per-row exactly like the torch cat: repeat for h_v (row r -> r//idx),
    # tile for h_G / c (row r -> r % B) — quirk preserved for B > 1.
    t_hv = h_v @ prep["w1_hv"]                                     # [B, hdim]
    t_gc = h_G @ prep["w1_hg"] + c @ prep["w1_c"] + prep["b1"]     # [B, hdim]
    z = jnp.repeat(t_hv, idx, axis=0) + jnp.tile(t_gc, (idx, 1))   # [R, hdim]

    scores = _fused_scores(h_flat, z, prep["w1_h"], prep["w2"], prep["b2"])
    return scores.reshape(-1, idx)


def _reference(params, h, h_v, h_G, c):
    """Pure-jnp reference (exact torch construction) for correctness check."""
    _, idx, ndim = h.shape
    x1 = h.reshape(-1, ndim)
    x2 = jnp.repeat(h_v, idx, axis=0)
    x3 = jnp.tile(h_G, (idx, 1))
    x4 = jnp.tile(c, (idx, 1))
    x = jnp.concatenate([x1, x2, x3, x4], axis=1)
    s = jnp.maximum(x @ params["w1"] + params["b1"], 0.0)
    o = s @ params["w2"] + params["b2"]
    return o.reshape(-1, idx)


# --------------------------------- Demo ----------------------------------- #
if __name__ == "__main__":
    NDIM, SDIM = 32, 16   # node / graph-state embedding dims
    B, IDX = 2, 8         # batch, number of existing nodes

    key = jax.random.PRNGKey(0)
    kp, kh, kv, kg, kc = jax.random.split(key, 5)

    params = init_nodes_params(kp, NDIM, SDIM)
    prep = prepare_nodes_params(params, NDIM, SDIM)   # one-time, outside jit

    h = jax.random.normal(kh, (B, IDX, NDIM), jnp.float32)
    h_v = jax.random.normal(kv, (B, NDIM), jnp.float32)
    h_G = jax.random.normal(kg, (B, SDIM), jnp.float32)
    c = jax.random.normal(kc, (B, SDIM), jnp.float32)

    out = nodes_forward(prep, h, h_v, h_G, c)
    jax.block_until_ready(out)

    ref = _reference(params, h, h_v, h_G, c)

    assert out.shape == (B, IDX)
    assert out.dtype == jnp.float32
    assert bool(jnp.all(jnp.isfinite(out)))
    assert bool(jnp.allclose(out, ref, rtol=1e-2, atol=1e-2))
    print("KERNEL_OK")
</pallas_src>

<mosaic_0001>
module attributes {stable_mosaic.version = 11 : i64} {
  func.func @_nodes_kernel(%arg0: i32, %arg1: memref<16x32xf32, #tpu.memory_space<vmem>>, %arg2: memref<16x48xf32, #tpu.memory_space<vmem>>, %arg3: memref<32x48xbf16, #tpu.memory_space<vmem>>, %arg4: memref<1x48xf32, #tpu.memory_space<vmem>>, %arg5: memref<1x1xf32, #tpu.memory_space<vmem>>, %arg6: memref<16x1xf32, #tpu.memory_space<vmem>>) attributes {dimension_semantics = [#tpu.dimension_semantics<parallel>], iteration_bounds = array<i64: 1>, scalar_prefetch = 0 : i64, scratch_operands = 0 : i64, tpu.core_type = #tpu.core_type<tc>, window_params = [{transform_indices = @transform_0, window_bounds = array<i64: 16, 32>}, {transform_indices = @transform_1, window_bounds = array<i64: 16, 48>}, {pipeline_mode = #tpu.pipeline_mode<synchronous>, transform_indices = @transform_2, window_bounds = array<i64: 32, 48>}, {pipeline_mode = #tpu.pipeline_mode<synchronous>, transform_indices = @transform_3, window_bounds = array<i64: 1, 48>}, {pipeline_mode = #tpu.pipeline_mode<synchronous>, transform_indices = @transform_4, window_bounds = array<i64: 1, 1>}, {transform_indices = @transform_5, window_bounds = array<i64: 16, 1>}]} {
    %c0 = arith.constant 0 : index
    %c0_0 = arith.constant 0 : index
    %0 = vector.load %arg1[%c0, %c0_0] : memref<16x32xf32, #tpu.memory_space<vmem>>, vector<16x32xf32>
    %1 = arith.truncf %0 : vector<16x32xf32> to vector<16x32xbf16>
    %c0_1 = arith.constant 0 : index
    %c0_2 = arith.constant 0 : index
    %2 = vector.load %arg3[%c0_1, %c0_2] : memref<32x48xbf16, #tpu.memory_space<vmem>>, vector<32x48xbf16>
    %cst = arith.constant dense<0.000000e+00> : vector<16x48xf32>
    %3 = tpu.matmul %1, %2, %cst {dimension_numbers = #tpu.dot_dimension_numbers<[1], [0], [0], [1], [0, 0, 1, 1], [], []>} : vector<16x32xbf16>, vector<32x48xbf16>, vector<16x48xf32> -> vector<16x48xf32>
    %c0_3 = arith.constant 0 : index
    %c0_4 = arith.constant 0 : index
    %4 = vector.load %arg2[%c0_3, %c0_4] : memref<16x48xf32, #tpu.memory_space<vmem>>, vector<16x48xf32>
    %5 = arith.addf %3, %4 : vector<16x48xf32>
    %cst_5 = arith.constant 0.000000e+00 : f32
    %6 = vector.broadcast %cst_5 : f32 to vector<16x48xf32>
    %7 = arith.maximumf %5, %6 : vector<16x48xf32>
    %c0_6 = arith.constant 0 : index
    %c0_7 = arith.constant 0 : index
    %8 = vector.load %arg4[%c0_6, %c0_7] : memref<1x48xf32, #tpu.memory_space<vmem>>, vector<1x48xf32>
    %9 = vector.broadcast %8 : vector<1x48xf32> to vector<16x48xf32>
    %10 = arith.mulf %7, %9 : vector<16x48xf32>
    %cst_8 = arith.constant dense<0.000000e+00> : vector<16xf32>
    %11 = vector.multi_reduction <add>, %10, %cst_8 [1] : vector<16x48xf32> to vector<16xf32>
    %12 = vector.shape_cast %11 : vector<16xf32> to vector<16x1xf32>
    %c0_9 = arith.constant 0 : index
    %c0_10 = arith.constant 0 : index
    %13 = vector.load %arg5[%c0_9, %c0_10] : memref<1x1xf32, #tpu.memory_space<vmem>>, vector<1x1xf32>
    %14 = vector.broadcast %13 : vector<1x1xf32> to vector<16x1xf32>
    %15 = arith.addf %12, %14 : vector<16x1xf32>
    %c0_11 = arith.constant 0 : index
    %c0_12 = arith.constant 0 : index
    %16 = vector.load %arg6[%c0_11, %c0_12] : memref<16x1xf32, #tpu.memory_space<vmem>>, vector<16x1xf32>
    tpu.vector_store %arg6[%c0_11, %c0_12], %15 {strides = array<i32>} : memref<16x1xf32, #tpu.memory_space<vmem>>, vector<16x1xf32>,
    return
  }
  func.func @transform_0(%arg0: i32) -> (i32, i32) {
    %c0_i32 = arith.constant 0 : i32
    %c0_i32_0 = arith.constant 0 : i32
    return %arg0, %c0_i32 : i32, i32
  }
  func.func @transform_1(%arg0: i32) -> (i32, i32) {
    %c0_i32 = arith.constant 0 : i32
    %c0_i32_0 = arith.constant 0 : i32
    return %arg0, %c0_i32 : i32, i32
  }
  func.func @transform_2(%arg0: i32) -> (i32, i32) {
    %c0_i32 = arith.constant 0 : i32
    %c0_i32_0 = arith.constant 0 : i32
    %c0_i32_1 = arith.constant 0 : i32
    return %c0_i32, %c0_i32_0 : i32, i32
  }
  func.func @transform_3(%arg0: i32) -> (i32, i32) {
    %c0_i32 = arith.constant 0 : i32
    %c0_i32_0 = arith.constant 0 : i32
    %c0_i32_1 = arith.constant 0 : i32
    return %c0_i32, %c0_i32_0 : i32, i32
  }
  func.func @transform_4(%arg0: i32) -> (i32, i32) {
    %c0_i32 = arith.constant 0 : i32
    %c0_i32_0 = arith.constant 0 : i32
    %c0_i32_1 = arith.constant 0 : i32
    return %c0_i32, %c0_i32_0 : i32, i32
  }
  func.func @transform_5(%arg0: i32) -> (i32, i32) {
    %c0_i32 = arith.constant 0 : i32
    %c0_i32_0 = arith.constant 0 : i32
    return %arg0, %c0_i32 : i32, i32
  }
}

</mosaic_0001>

<llo_original>
// kernel: squeeze.1
$region0: #{squeeze.1}
  %s0 = inlined_call_operand.vmem [shape: f32[16], index: 0, kind: input, shape index: {}]
  %s1 = inlined_call_operand.hbm [shape: f32[2,8], index: 1, kind: output, shape index: {}]
  $region1: #{squeeze.1} parent=0
    #allocation0 [shape = 'u8[1024]{0}', space=vmem, size = 0x400, scoped, tag = 'operand span for operand 1']
    #allocation1 [shape = 's32[1]{0}', space=sflag, size = 0x4, scoped, tag = 'scoped memory for squeeze.1']
    #allocation2 [shape = 'u8[4096]{0}', space=vmem, size = 0x1000, scoped, tag = 'scoped mem for output reshape']
    #allocation3 [shape = 'u8[4096]{0}', space=vmem, size = 0x1000, scoped, tag = 'scoped mem for input reshape']
    %2 = vsyncpa [#allocation1], 0
    %s4 = sshllo.u32 0, 1
    %v5 = vld [vmem:[%s0] sm:%s4]
    %6 = vst [vmem:[#allocation3] sm:%s4] %v5
    %v7 = vld [vmem:[#allocation3] sm:$0x1]
    %vm8 = vcmask 64512
    %9 = vst.msk [vmem:[#allocation2] sm:$0x1] %vm8, %v7
    %v10 = vld [vmem:[#allocation3] sm:$0x1]
    %11 = vrot.lane.b32.xlu0 %v10, 120
    %v12 = vpop.permute.xlu0 %11
    %vm13 = vcmask 64512
    %s14 = scalar_lea.vmem [#allocation2], 1
    %15 = vst.msk [vmem:[%s14] sm:$0x1] %vm13, %v12
    %s17 = sshllo.u32 0, 2
    %v19 = vld [vmem:[#allocation2] sm:%s17]
    %s20 = sshllo.u32 0, 2
    %21 = vst [vmem:[#allocation0] sm:%s20] %v19
    %s23 = ssub.s32 32, 32
    %24 = vsyncadd [#allocation1], %s23
    %s26 = sshll.u32 [#allocation0], 4
    %s27 = int_to_ptr.vmem [resolvable:$true] %s26
    %29 = dma.vmem_to_hbm [thread:$0]  %s27, 32, %s1, [#allocation1]
    %30 = dma.done [#allocation1], 32
    %31 = vsyncpa [#allocation1], 1

// kernel: nodes_forward.1
$region0: #{nodes_forward.1}
  #allocation0 [shape = 'u32[]', space=smem, size = 0x4, offset = 0x4, fixed_abs, tag = 'smem constant byte address 0x4 - core index']
  #allocation1 [shape = 'u32[144,128]{1,0:T(1,128)}', space=vmem, size = 0x12000, scoped, tag = 'internal scratch']
  #allocation2 [shape = 'f32[1,1]{1,0:T(1,128)S(1)}', space=vmem, size = 0x200, scoped, tag = 'scoped memory for nodes_forward.1']
  %s0 = inlined_call_operand.vmem [shape: f32[16,32], index: 0, kind: input, shape index: {}]
  %s1 = inlined_call_operand.vmem [shape: f32[16,48], index: 1, kind: input, shape index: {}]
  %s2 = inlined_call_operand.vmem [shape: bf16[32,48], index: 2, kind: input, shape index: {}]
  %s3 = inlined_call_operand.vmem [shape: f32[1,48], index: 3, kind: input, shape index: {}]
  %s4 = inlined_call_operand.<no memory space> [shape: f32[1,1], index: 4, kind: input, shape index: {}]
  %s5 = inlined_call_operand.vmem [shape: f32[16,1], index: 5, kind: output, shape index: {}]
  %s6 = sld [smem:[#allocation0]]
  $region30: #{nodes_forward.1} parent=0
    _
  %s8 = ssub.s32 1, %s6
  %s9 = scalar_select 0, %s8, %s6
  %v10 = vstv %s4
  %11 = vst [vmem:[#allocation2] sm:$0x1] %v10
  // Predicated region
  $region2: #{nodes_forward.1} parent=0 // pred_check
    _
  $region3: #{nodes_forward.1} parent=0 // pred_check_branch
    %13 = sbr.rel (0) target = $region5
  $region4: #{nodes_forward.1} parent=0 // pred_region
    _
  $region5: #{nodes_forward.1} parent=0 // pred_fallthru
    _
  // Predicated region
  $region6: #{nodes_forward.1} parent=0 // pred_check
    _
  $region7: #{nodes_forward.1} parent=0 // pred_check_branch
    %15 = sbr.rel (0) target = $region9
  $region8: #{nodes_forward.1} parent=0 // pred_region
    _
  $region9: #{nodes_forward.1} parent=0 // pred_fallthru
    _
  // Predicated region
  $region10: #{nodes_forward.1} parent=0 // pred_check
    _
  $region11: #{nodes_forward.1} parent=0 // pred_check_branch
    %17 = sbr.rel (0) target = $region13
  $region12: #{nodes_forward.1} parent=0 // pred_region
    _
  $region13: #{nodes_forward.1} parent=0 // pred_fallthru
    _
  // Predicated region
  $region14: #{nodes_forward.1} parent=0 // pred_check
    _
  $region15: #{nodes_forward.1} parent=0 // pred_check_branch
    %19 = sbr.rel (0) target = $region17
  $region16: #{nodes_forward.1} parent=0 // pred_region
    _
  $region17: #{nodes_forward.1} parent=0 // pred_fallthru
    _
  // Predicated region
  $region18: #{nodes_forward.1} parent=0 // pred_check
    _
  $region19: #{nodes_forward.1} parent=0 // pred_check_branch
    %21 = sbr.rel (0) target = $region21
  $region20: #{nodes_forward.1} parent=0 // pred_region
    _
  $region21: #{nodes_forward.1} parent=0 // pred_fallthru
    _
  %v23 = vld [vmem:[%s0] sm:$0xff]
  %v24 = vld [vmem:[%s0 + $0x8] sm:$0xff]
  %v25 = vpack.c.bf16 %v24, %v23
  %v26 = vld [vmem:[%s2] sm:$0xf]
  %v27 = vld [vmem:[%s2 + $0x4] sm:$0xf]
  %v28 = vld [vmem:[%s2 + $0x8] sm:$0xf]
  %v29 = vld [vmem:[%s2 + $0xc] sm:$0xf]
  %v30 = vld [vmem:[%s1] sm:$0xff]
  %v31 = vld [vmem:[%s1 + $0x8] sm:$0xff]
  %v36 = vunpack.c.l.b16 %v26
  %v37 = vunpack.c.l.b16 %v27
  %v38 = vunpack.c.l.b16 %v28
  %v39 = vunpack.c.l.b16 %v29
  %v40 = vpack.c.b16 %v37, %v36
  %v41 = vpack.c.b16 %v39, %v38
  %vm44 = vcmask 261120
  %v46 = vsel %vm44, %v25, 0
  %48 = vmatprep.subr.bf16.mxu0 0
  %49 = vmatpush1.bf16.msra.mxu0 %v40
  %50 = vmatprep.subr.bf16.mxu0 0
  %51 = vmatpush1.bf16.msra.mxu0 %v41
  %52 = vmatprep.subr.bf16.mxu0 0
  %53 = vmatpush1.bf16.msra.mxu0 0
  %54 = vmatprep.subr.bf16.mxu0 0
  %55 = vmatpush1.bf16.msra.mxu0 0
  %56 = vmatprep.subr.bf16.mxu0 0
  %57 = vmatpush1.bf16.msra.mxu0 0
  %58 = vmatprep.subr.bf16.mxu0 0
  %59 = vmatpush1.bf16.msra.mxu0 0
  %60 = vmatprep.subr.bf16.mxu0 0
  %61 = vmatpush1.bf16.msra.mxu0 0
  %62 = vmatprep.subr.bf16.mxu0 0
  %63 = vmatpush1.bf16.msra.mxu0 0
  %64 = vmatprep.subr.bf16.mxu0 0
  %65 = vmatpush1.bf16.msra.mxu0 0
  %66 = vmatprep.subr.bf16.mxu0 0
  %67 = vmatpush1.bf16.msra.mxu0 0
  %68 = vmatprep.subr.bf16.mxu0 0
  %69 = vmatpush1.bf16.msra.mxu0 0
  %70 = vmatprep.subr.bf16.mxu0 0
  %71 = vmatpush1.bf16.msra.mxu0 0
  %72 = vmatprep.subr.bf16.mxu0 0
  %73 = vmatpush1.bf16.msra.mxu0 0
  %74 = vmatprep.subr.bf16.mxu0 0
  %75 = vmatpush1.bf16.msra.mxu0 0
  %76 = vmatprep.subr.bf16.mxu0 0
  %77 = vmatpush1.bf16.msra.mxu0 0
  %78 = vmatprep.subr.bf16.mxu0 0
  %79 = vmatpush1.bf16.msra.mxu0 0
  %80 = vmatprep.mubr.bf16.mxu0 0
  %81 = vmatmul.mubr.bf16.gmra.mrb[0].mxu0 %v46
  %v82 = vpop.f32.mrb[0].mxu0
  %v83 = vadd.f32 %v30, %v82
  %v84 = vpop.f32.mrb[0].mxu0
  %v85 = vpop.f32.mrb[0].mxu0
  %v86 = vadd.f32 %v31, %v85
  %v87 = vpop.f32.mrb[0].mxu0
  %88 = vdwg.mxu0
  %v89 = vmax.f32 %v83, 0.0
  %v90 = vmax.f32 %v86, 0.0
  %v91 = vld [vmem:[%s3] sm:$0x1]
  %v93 = vlaneseq
  %v94 = vshrl.u32 %v93, 7
  %v95 = vsub.s32 0, %v94
  %v96 = vrot.slane %v91, %v95
  %v98 = vmul.f32 %v89, %v96
  %v99 = vmul.f32 %v90, %v96
  %vm100 = vcmask 392192
  %v101 = vsel %vm100, %v98, 0.0
  %102 = vadd.xlane.f32.xlu0 %v101
  %v103 = vpop.xlane.xlu0 %102
  %v104 = vsel %vm100, %v99, 0.0
  %105 = vadd.xlane.f32.xlu0 %v104
  %v106 = vpop.xlane.xlu0 %105
  %v107 = vld [vmem:[#allocation2] sm:$0x1]
  %v109 = vlaneseq
  %v110 = vshrl.u32 %v109, 7
  %v111 = vsub.s32 0, %v110
  %v112 = vrot.slane %v107, %v111
  %v114 = vadd.f32 %v103, %v112
  %v115 = vadd.f32 %v106, %v112
  %vm116 = vcmask 7168
  %117 = vst.msk [vmem:[%s5] sm:$0xff] %vm116, %v114
  %118 = vst.msk [vmem:[%s5 + $0x8] sm:$0xff] %vm116, %v115
  // Predicated region
  $region22: #{nodes_forward.1} parent=0 // pred_check
    _
  $region23: #{nodes_forward.1} parent=0 // pred_check_branch
    %120 = sbr.rel (0) target = $region25
  $region24: #{nodes_forward.1} parent=0 // pred_region
    _
  $region25: #{nodes_forward.1} parent=0 // pred_fallthru
    _
  // Predicated region
  $region26: #{nodes_forward.1} parent=0 // pred_check
    _
  $region27: #{nodes_forward.1} parent=0 // pred_check_branch
    %122 = sbr.rel (0) target = $region29
  $region28: #{nodes_forward.1} parent=0 // pred_region
    _
  $region29: #{nodes_forward.1} parent=0 // pred_fallthru
    _

</llo_original>
